<compile_context>
chip_gen: v6e
topology: v6e:2x2x1
jax: 0.10.0
libtpu: 0.0.40
codegen_flags: <defaults>
</compile_context>

<pallas_src>
import jax
import jax.numpy as jnp
from jax.experimental import pallas as pl
from jax.experimental.pallas import tpu as pltpu

NUM_FTRS = 512      # InceptionResnetV1.logits.in_features
HIDDEN1 = 512
HIDDEN2 = 256
NUM_CLASSES = 1


def _cdiv(a, b):
    return (a + b - 1) // b


def _round_up(n, m):
    return _cdiv(n, m) * m


def _head_kernel(x_ref, w1_ref, b1_ref, w2_ref, b2_ref, w3_ref, b3_ref, o_ref):
    """Fused 3-layer MLP head for one batch tile (bf16 MXU, f32 accumulation)."""
    x = x_ref[...].astype(jnp.bfloat16)                          # (tb, 512)

    h1 = jnp.dot(x, w1_ref[...], preferred_element_type=jnp.float32) + b1_ref[...]
    h1 = jnp.maximum(h1, 0.0)
    # Dropout(0.5): identity in eval mode.

    h2 = jnp.dot(h1.astype(jnp.bfloat16), w2_ref[...],
                 preferred_element_type=jnp.float32) + b2_ref[...]
    h2 = jnp.maximum(h2, 0.0)                                    # (tb, 256) f32
    # Dropout(0.5): identity in eval mode.

    # Final Linear(256 -> 1), lane-dense: (1, 256) . (tb, 256)^T -> (1, tb),
    # so the store is a dense row of batch results instead of a lane-1 column.
    out = jax.lax.dot_general(
        w3_ref[...], h2.astype(jnp.bfloat16),
        dimension_numbers=(((1,), (1,)), ((), ())),
        preferred_element_type=jnp.float32)                      # (1, tb)
    out = out + b3_ref[0, 0]
    o_ref[...] = out[None].astype(o_ref.dtype)                   # (1, 1, tb)


def classificator_head(x, params, *, block_b=256):
    """x: [B, NUM_FTRS] float32 embedding features -> [B, NUM_CLASSES]."""
    w1, b1, w2, b2, w3, b3 = params
    B = x.shape[0]

    # Divisor-aware batch tile (multiple of 8 sublanes): minimizes padding
    # (B=260 -> tb=136, b_pad=272) and yields >=2 grid steps once B > block_b.
    num_tiles_target = _cdiv(B, block_b)
    tb = _round_up(_cdiv(B, num_tiles_target), 8)
    b_pad = _round_up(B, tb)
    n_tiles = b_pad // tb

    if b_pad != B:
        x = jnp.pad(x, ((0, b_pad - B), (0, 0)))

    # bf16 weights for the MXU; f32 accumulation kept via preferred_element_type.
    w1_bf = w1.astype(jnp.bfloat16)
    w2_bf = w2.astype(jnp.bfloat16)
    w3_row = w3.reshape(1, HIDDEN2).astype(jnp.bfloat16)

    # Weights / biases: constant block index -> fetched once, stay resident.
    resident = lambda shape: pl.BlockSpec(shape, lambda i: (0,) * len(shape))

    out = pl.pallas_call(
        _head_kernel,
        # Lane-dense output: one (1, tb) row per batch tile.
        out_shape=jax.ShapeDtypeStruct((n_tiles, 1, tb), jnp.float32),
        grid=(n_tiles,),
        in_specs=[
            pl.BlockSpec((tb, NUM_FTRS), lambda i: (i, 0)),    # x streamed per tile
            resident((NUM_FTRS, HIDDEN1)),                     # w1 (0.5 MiB bf16)
            resident((1, HIDDEN1)),                            # b1 (f32)
            resident((HIDDEN1, HIDDEN2)),                      # w2 (0.25 MiB bf16)
            resident((1, HIDDEN2)),                            # b2 (f32)
            resident((1, HIDDEN2)),                            # w3 as bf16 row
            pl.BlockSpec((1, 1), lambda i: (0, 0),
                         memory_space=pltpu.MemorySpace.SMEM), # b3 scalar in SMEM
        ],
        out_specs=pl.BlockSpec((1, 1, tb), lambda i: (i, 0, 0)),
        compiler_params=pltpu.CompilerParams(
            dimension_semantics=("parallel",),  # v7x: shard batch tiles over 2 TCs
        ),
    )(x, w1_bf, b1, w2_bf, b2, w3_row, b3)

    # (n_tiles, 1, tb) -> (b_pad, 1) -> drop padded rows.
    return out.reshape(b_pad, 1)[:B]


def init_params(key):
    """Deterministic init mimicking nn.Linear default (U[-1/sqrt(fan_in), +])."""
    def linear(key, fan_in, fan_out):
        kw, kb = jax.random.split(key)
        bound = 1.0 / jnp.sqrt(fan_in)
        w = jax.random.uniform(kw, (fan_in, fan_out), jnp.float32, -bound, bound)
        b = jax.random.uniform(kb, (1, fan_out), jnp.float32, -bound, bound)
        return w, b

    k1, k2, k3 = jax.random.split(key, 3)
    w1, b1 = linear(k1, NUM_FTRS, HIDDEN1)
    w2, b2 = linear(k2, HIDDEN1, HIDDEN2)
    w3, b3 = linear(k3, HIDDEN2, NUM_CLASSES)
    return (w1, b1, w2, b2, w3, b3)


def reference_head(x, params):
    """Full-f32 reference (matches the PyTorch module in eval mode)."""
    w1, b1, w2, b2, w3, b3 = params
    h1 = jnp.maximum(x @ w1 + b1, 0.0)
    h2 = jnp.maximum(h1 @ w2 + b2, 0.0)
    return h2 @ w3 + b3


if __name__ == "__main__":
    key = jax.random.PRNGKey(0)
    k_params, k_x1, k_x2 = jax.random.split(key, 3)

    params = init_params(k_params)

    # Tolerance is loosened vs. the f32 reference because the kernel feeds the
    # MXU bf16 operands (f32 accumulation) — expected precision change.
    ATOL = RTOL = 3e-2

    # Small-batch case (B=2, padded up to one 8-row sublane tile, grid=(1,)).
    B = 2
    x_feat = jax.random.normal(k_x1, (B, NUM_FTRS), jnp.float32)
    out = jax.block_until_ready(classificator_head(x_feat, params))
    ref = reference_head(x_feat, params)
    assert out.shape == (B, NUM_CLASSES)
    assert jnp.allclose(out, ref, atol=ATOL, rtol=RTOL), "mismatch vs reference (B=2)"

    # Multi-tile case exercising the divisor-aware tiling (tb=136, 2 tiles).
    B2 = 260
    x_big = jax.random.normal(k_x2, (B2, NUM_FTRS), jnp.float32)
    out2 = jax.block_until_ready(classificator_head(x_big, params))
    ref2 = reference_head(x_big, params)
    assert out2.shape == (B2, NUM_CLASSES)
    assert jnp.allclose(out2, ref2, atol=ATOL, rtol=RTOL), "mismatch vs reference (B=260)"

    print("KERNEL_OK")
</pallas_src>

<mosaic_0001>
module attributes {stable_mosaic.version = 11 : i64} {
  func.func @_head_kernel(%arg0: i32, %arg1: memref<8x512xf32, #tpu.memory_space<vmem>>, %arg2: memref<512x512xbf16, #tpu.memory_space<vmem>>, %arg3: memref<1x512xf32, #tpu.memory_space<vmem>>, %arg4: memref<512x256xbf16, #tpu.memory_space<vmem>>, %arg5: memref<1x256xf32, #tpu.memory_space<vmem>>, %arg6: memref<1x256xbf16, #tpu.memory_space<vmem>>, %arg7: memref<1x1xf32, #tpu.memory_space<smem>>, %arg8: memref<1x1x8xf32, #tpu.memory_space<vmem>>) attributes {dimension_semantics = [#tpu.dimension_semantics<parallel>], iteration_bounds = array<i64: 1>, scalar_prefetch = 0 : i64, scratch_operands = 0 : i64, tpu.core_type = #tpu.core_type<tc>, window_params = [{transform_indices = @transform_0, window_bounds = array<i64: 8, 512>}, {pipeline_mode = #tpu.pipeline_mode<synchronous>, transform_indices = @transform_1, window_bounds = array<i64: 512, 512>}, {pipeline_mode = #tpu.pipeline_mode<synchronous>, transform_indices = @transform_2, window_bounds = array<i64: 1, 512>}, {pipeline_mode = #tpu.pipeline_mode<synchronous>, transform_indices = @transform_3, window_bounds = array<i64: 512, 256>}, {pipeline_mode = #tpu.pipeline_mode<synchronous>, transform_indices = @transform_4, window_bounds = array<i64: 1, 256>}, {pipeline_mode = #tpu.pipeline_mode<synchronous>, transform_indices = @transform_5, window_bounds = array<i64: 1, 256>}, {transform_indices = @transform_6, window_bounds = array<i64: 1, 1>}, {transform_indices = @transform_7, window_bounds = array<i64: 1, 1, 8>}]} {
    %c0 = arith.constant 0 : index
    %c0_0 = arith.constant 0 : index
    %0 = vector.load %arg1[%c0, %c0_0] : memref<8x512xf32, #tpu.memory_space<vmem>>, vector<8x512xf32>
    %1 = arith.truncf %0 : vector<8x512xf32> to vector<8x512xbf16>
    %c0_1 = arith.constant 0 : index
    %c0_2 = arith.constant 0 : index
    %2 = vector.load %arg2[%c0_1, %c0_2] : memref<512x512xbf16, #tpu.memory_space<vmem>>, vector<512x512xbf16>
    %cst = arith.constant dense<0.000000e+00> : vector<8x512xf32>
    %3 = tpu.matmul %1, %2, %cst {dimension_numbers = #tpu.dot_dimension_numbers<[1], [0], [0], [1], [0, 0, 1, 1], [], []>} : vector<8x512xbf16>, vector<512x512xbf16>, vector<8x512xf32> -> vector<8x512xf32>
    %c0_3 = arith.constant 0 : index
    %c0_4 = arith.constant 0 : index
    %4 = vector.load %arg3[%c0_3, %c0_4] : memref<1x512xf32, #tpu.memory_space<vmem>>, vector<1x512xf32>
    %5 = vector.broadcast %4 : vector<1x512xf32> to vector<8x512xf32>
    %6 = arith.addf %3, %5 : vector<8x512xf32>
    %cst_5 = arith.constant 0.000000e+00 : f32
    %7 = vector.broadcast %cst_5 : f32 to vector<8x512xf32>
    %8 = arith.maximumf %6, %7 : vector<8x512xf32>
    %9 = arith.truncf %8 : vector<8x512xf32> to vector<8x512xbf16>
    %c0_6 = arith.constant 0 : index
    %c0_7 = arith.constant 0 : index
    %10 = vector.load %arg4[%c0_6, %c0_7] : memref<512x256xbf16, #tpu.memory_space<vmem>>, vector<512x256xbf16>
    %cst_8 = arith.constant dense<0.000000e+00> : vector<8x256xf32>
    %11 = tpu.matmul %9, %10, %cst_8 {dimension_numbers = #tpu.dot_dimension_numbers<[1], [0], [0], [1], [0, 0, 1, 1], [], []>} : vector<8x512xbf16>, vector<512x256xbf16>, vector<8x256xf32> -> vector<8x256xf32>
    %c0_9 = arith.constant 0 : index
    %c0_10 = arith.constant 0 : index
    %12 = vector.load %arg5[%c0_9, %c0_10] : memref<1x256xf32, #tpu.memory_space<vmem>>, vector<1x256xf32>
    %13 = vector.broadcast %12 : vector<1x256xf32> to vector<8x256xf32>
    %14 = arith.addf %11, %13 : vector<8x256xf32>
    %cst_11 = arith.constant 0.000000e+00 : f32
    %15 = vector.broadcast %cst_11 : f32 to vector<8x256xf32>
    %16 = arith.maximumf %14, %15 : vector<8x256xf32>
    %c0_12 = arith.constant 0 : index
    %c0_13 = arith.constant 0 : index
    %17 = vector.load %arg6[%c0_12, %c0_13] : memref<1x256xbf16, #tpu.memory_space<vmem>>, vector<1x256xbf16>
    %18 = arith.truncf %16 : vector<8x256xf32> to vector<8x256xbf16>
    %cst_14 = arith.constant dense<0.000000e+00> : vector<1x8xf32>
    %19 = tpu.matmul %17, %18, %cst_14 {dimension_numbers = #tpu.dot_dimension_numbers<[1], [1], [0], [0], [0, 0, 1, 0], [], []>} : vector<1x256xbf16>, vector<8x256xbf16>, vector<1x8xf32> -> vector<1x8xf32>
    %c0_15 = arith.constant 0 : index
    %c0_16 = arith.constant 0 : index
    %20 = memref.load %arg7[%c0_15, %c0_16] : memref<1x1xf32, #tpu.memory_space<smem>>
    %21 = vector.broadcast %20 : f32 to vector<1x8xf32>
    %22 = arith.addf %19, %21 : vector<1x8xf32>
    %23 = vector.shape_cast %22 : vector<1x8xf32> to vector<1x1x8xf32>
    %c0_17 = arith.constant 0 : index
    %c0_18 = arith.constant 0 : index
    %c0_19 = arith.constant 0 : index
    %24 = vector.load %arg8[%c0_17, %c0_18, %c0_19] : memref<1x1x8xf32, #tpu.memory_space<vmem>>, vector<1x1x8xf32>
    tpu.vector_store %arg8[%c0_17, %c0_18, %c0_19], %23 {strides = array<i32>} : memref<1x1x8xf32, #tpu.memory_space<vmem>>, vector<1x1x8xf32>,
    return
  }
  func.func @transform_0(%arg0: i32) -> (i32, i32) {
    %c0_i32 = arith.constant 0 : i32
    %c0_i32_0 = arith.constant 0 : i32
    return %arg0, %c0_i32 : i32, i32
  }
  func.func @transform_1(%arg0: i32) -> (i32, i32) {
    %c0_i32 = arith.constant 0 : i32
    %c0_i32_0 = arith.constant 0 : i32
    %c0_i32_1 = arith.constant 0 : i32
    return %c0_i32, %c0_i32_0 : i32, i32
  }
  func.func @transform_2(%arg0: i32) -> (i32, i32) {
    %c0_i32 = arith.constant 0 : i32
    %c0_i32_0 = arith.constant 0 : i32
    %c0_i32_1 = arith.constant 0 : i32
    return %c0_i32, %c0_i32_0 : i32, i32
  }
  func.func @transform_3(%arg0: i32) -> (i32, i32) {
    %c0_i32 = arith.constant 0 : i32
    %c0_i32_0 = arith.constant 0 : i32
    %c0_i32_1 = arith.constant 0 : i32
    return %c0_i32, %c0_i32_0 : i32, i32
  }
  func.func @transform_4(%arg0: i32) -> (i32, i32) {
    %c0_i32 = arith.constant 0 : i32
    %c0_i32_0 = arith.constant 0 : i32
    %c0_i32_1 = arith.constant 0 : i32
    return %c0_i32, %c0_i32_0 : i32, i32
  }
  func.func @transform_5(%arg0: i32) -> (i32, i32) {
    %c0_i32 = arith.constant 0 : i32
    %c0_i32_0 = arith.constant 0 : i32
    %c0_i32_1 = arith.constant 0 : i32
    return %c0_i32, %c0_i32_0 : i32, i32
  }
  func.func @transform_6(%arg0: i32) -> (i32, i32) {
    %c0_i32 = arith.constant 0 : i32
    %c0_i32_0 = arith.constant 0 : i32
    %c0_i32_1 = arith.constant 0 : i32
    return %c0_i32, %c0_i32_0 : i32, i32
  }
  func.func @transform_7(%arg0: i32) -> (i32, i32, i32) {
    %c0_i32 = arith.constant 0 : i32
    %c0_i32_0 = arith.constant 0 : i32
    %c0_i32_1 = arith.constant 0 : i32
    return %arg0, %c0_i32, %c0_i32_0 : i32, i32, i32
  }
}

</mosaic_0001>

<llo_original>
// kernel: tpu_custom_call.1
$region0: #{tpu_custom_call.1}
  #allocation0 [shape = 'u32[]', space=smem, size = 0x4, offset = 0x4, fixed_abs, tag = 'smem constant byte address 0x4 - core index']
  #allocation1 [shape = 'u32[144,128]{1,0:T(1,128)}', space=vmem, size = 0x12000, scoped, tag = 'internal scratch']
  #allocation2 [shape = 'f32[1,1]{1,0:T(1,128)S(6)}', space=smem, size = 0x200, scoped, tag = 'scoped memory for tpu_custom_call.1']
  %s0 = inlined_call_operand.hbm [shape: f32[8,512], index: 0, kind: input, shape index: {}]
  %s1 = inlined_call_operand.hbm [shape: bf16[512,512], index: 1, kind: input, shape index: {}]
  %s2 = inlined_call_operand.vmem [shape: f32[1,512], index: 2, kind: input, shape index: {}]
  %s3 = inlined_call_operand.hbm [shape: bf16[512,256], index: 3, kind: input, shape index: {}]
  %s4 = inlined_call_operand.vmem [shape: f32[1,256], index: 4, kind: input, shape index: {}]
  %s5 = inlined_call_operand.vmem [shape: bf16[1,256], index: 5, kind: input, shape index: {}]
  %s6 = inlined_call_operand.<no memory space> [shape: f32[1,1], index: 6, kind: input, shape index: {}]
  %s7 = inlined_call_operand.hbm [shape: f32[1,1,8], index: 7, kind: output, shape index: {}]
  %s8 = sld [smem:[#allocation0]]
  $region50: #{tpu_custom_call.1} parent=0
    _
  %s10 = ssub.s32 1, %s8
  %s11 = scalar_select 0, %s10, %s8
  %12 = sst [smem:[#allocation2]] %s6
  $region1: #{tpu_custom_call.1} parent=0
    #allocation3 [shape = 'u8[16384]{0}', space=vmem, size = 0x4000, scoped, tag = 'input window, operand 0, single buffered']
    #allocation4 [shape = 's32[1]{0}', space=sflag, size = 0x4, scoped, tag = 'scoped memory for tpu_custom_call.1']
    #allocation5 [shape = 's32[1]{0}', space=sflag, size = 0x4, scoped, tag = 'scoped memory for tpu_custom_call.1']
    #allocation6 [shape = 'u8[524288]{0}', space=vmem, size = 0x80000, scoped, tag = 'input window, operand 1, single buffered']
    #allocation7 [shape = 's32[1]{0}', space=sflag, size = 0x4, scoped, tag = 'scoped memory for tpu_custom_call.1']
    #allocation8 [shape = 'u8[262144]{0}', space=vmem, size = 0x40000, scoped, tag = 'input window, operand 3, single buffered']
    #allocation9 [shape = 'u8[512]{0}', space=vmem, size = 0x400, scoped, tag = 'output window, operand 0, single buffered']
    %13 = vsyncpa [#allocation4], 0
    %14 = vsyncpa [#allocation7], 0
    %15 = vsyncpa [#allocation5], 0
    // Predicated region
    $region2: #{tpu_custom_call.1} parent=1 // pred_check
      _
    $region3: #{tpu_custom_call.1} parent=1 // pred_check_branch
      %17 = sbr.rel (0) target = $region5
    $region4: #{tpu_custom_call.1} parent=1 // pred_region
      %s19 = ssub.s32 512, 512
      %20 = vsyncadd [#allocation4], %s19
      %s22 = sshll.u32 [#allocation3], 4
      %s23 = int_to_ptr.vmem [resolvable:$true] %s22
      %25 = dma.hbm_to_vmem [thread:$0]  %s0, 512, %s23, [#allocation4]
    $region5: #{tpu_custom_call.1} parent=1 // pred_fallthru
      _
    // Predicated region
    $region6: #{tpu_custom_call.1} parent=1 // pred_check
      _
    $region7: #{tpu_custom_call.1} parent=1 // pred_check_branch
      %27 = sbr.rel (0) target = $region9
    $region8: #{tpu_custom_call.1} parent=1 // pred_region
      %s29 = ssub.s32 16384, 16384
      %30 = vsyncadd [#allocation7], %s29
      %s31 = sshll.u32 [#allocation6], 4
      %s32 = int_to_ptr.vmem [resolvable:$true] %s31
      %37 = dma.hbm_to_vmem [thread:$0]  %s1, 16384, %s32, [#allocation7], 256, 256, 16
    $region9: #{tpu_custom_call.1} parent=1 // pred_fallthru
      _
    // Predicated region
    $region10: #{tpu_custom_call.1} parent=1 // pred_check
      _
    $region11: #{tpu_custom_call.1} parent=1 // pred_check_branch
      %39 = sbr.rel (0) target = $region13
    $region12: #{tpu_custom_call.1} parent=1 // pred_region
      _
    $region13: #{tpu_custom_call.1} parent=1 // pred_fallthru
      _
    // Predicated region
    $region14: #{tpu_custom_call.1} parent=1 // pred_check
      _
    $region15: #{tpu_custom_call.1} parent=1 // pred_check_branch
      %41 = sbr.rel (0) target = $region17
    $region16: #{tpu_custom_call.1} parent=1 // pred_region
      %s43 = ssub.s32 8192, 8192
      %44 = vsyncadd [#allocation7], %s43
      %s45 = sshll.u32 [#allocation8], 4
      %s46 = int_to_ptr.vmem [resolvable:$true] %s45
      %51 = dma.hbm_to_vmem [thread:$0]  %s3, 8192, %s46, [#allocation7], 128, 128, 8
    $region17: #{tpu_custom_call.1} parent=1 // pred_fallthru
      _
    // Predicated region
    $region18: #{tpu_custom_call.1} parent=1 // pred_check
      _
    $region19: #{tpu_custom_call.1} parent=1 // pred_check_branch
      %53 = sbr.rel (0) target = $region21
    $region20: #{tpu_custom_call.1} parent=1 // pred_region
      _
    $region21: #{tpu_custom_call.1} parent=1 // pred_fallthru
      _
    // Predicated region
    $region22: #{tpu_custom_call.1} parent=1 // pred_check
      _
    $region23: #{tpu_custom_call.1} parent=1 // pred_check_branch
      %55 = sbr.rel (0) target = $region25
    $region24: #{tpu_custom_call.1} parent=1 // pred_region
      _
    $region25: #{tpu_custom_call.1} parent=1 // pred_fallthru
      _
    // Predicated region
    $region26: #{tpu_custom_call.1} parent=1 // pred_check
      _
    $region27: #{tpu_custom_call.1} parent=1 // pred_check_branch
      %57 = sbr.rel (0) target = $region29
    $region28: #{tpu_custom_call.1} parent=1 // pred_region
      _
    $region29: #{tpu_custom_call.1} parent=1 // pred_fallthru
      _
    // Predicated region
    $region30: #{tpu_custom_call.1} parent=1 // pred_check
      _
    $region31: #{tpu_custom_call.1} parent=1 // pred_check_branch
      %59 = sbr.rel (0) target = $region33
    $region32: #{tpu_custom_call.1} parent=1 // pred_region
      %60 = dma.done [#allocation4], 512
    $region33: #{tpu_custom_call.1} parent=1 // pred_fallthru
      _
    // Predicated region
    $region34: #{tpu_custom_call.1} parent=1 // pred_check
      _
    $region35: #{tpu_custom_call.1} parent=1 // pred_check_branch
      %62 = sbr.rel (0) target = $region37
    $region36: #{tpu_custom_call.1} parent=1 // pred_region
      %63 = dma.done [#allocation7], 16384
    $region37: #{tpu_custom_call.1} parent=1 // pred_fallthru
      _
    // Predicated region
    $region38: #{tpu_custom_call.1} parent=1 // pred_check
      _
    $region39: #{tpu_custom_call.1} parent=1 // pred_check_branch
      %65 = sbr.rel (0) target = $region41
    $region40: #{tpu_custom_call.1} parent=1 // pred_region
      %66 = dma.done [#allocation7], 8192
    $region41: #{tpu_custom_call.1} parent=1 // pred_fallthru
      _
    %v68 = vld [vmem:[#allocation3] sm:$0xff]
    %v69 = vld [vmem:[#allocation3 + $0x8] sm:$0xff]
    %v70 = vld [vmem:[#allocation3 + $0x10] sm:$0xff]
    %v71 = vld [vmem:[#allocation3 + $0x18] sm:$0xff]
    %v72 = vpack.c.bf16 %v68, %v68
    %v73 = vpack.c.bf16 %v69, %v69
    %v74 = vpack.c.bf16 %v70, %v70
    %v75 = vpack.c.bf16 %v71, %v71
    %v76 = vld [vmem:[#allocation6] sm:$0xff]
    %v77 = vld [vmem:[#allocation6 + $0x8] sm:$0xff]
    %v78 = vld [vmem:[#allocation6 + $0x10] sm:$0xff]
    %v79 = vld [vmem:[#allocation6 + $0x18] sm:$0xff]
    %v80 = vld [vmem:[#allocation6 + $0x20] sm:$0xff]
    %v81 = vld [vmem:[#allocation6 + $0x28] sm:$0xff]
    %v82 = vld [vmem:[#allocation6 + $0x30] sm:$0xff]
    %v83 = vld [vmem:[#allocation6 + $0x38] sm:$0xff]
    %v84 = vld [vmem:[#allocation6 + $0x40] sm:$0xff]
    %v85 = vld [vmem:[#allocation6 + $0x48] sm:$0xff]
    %v86 = vld [vmem:[#allocation6 + $0x50] sm:$0xff]
    %v87 = vld [vmem:[#allocation6 + $0x58] sm:$0xff]
    %v88 = vld [vmem:[#allocation6 + $0x60] sm:$0xff]
    %v89 = vld [vmem:[#allocation6 + $0x68] sm:$0xff]
    %v90 = vld [vmem:[#allocation6 + $0x70] sm:$0xff]
    %v91 = vld [vmem:[#allocation6 + $0x78] sm:$0xff]
    %v92 = vld [vmem:[#allocation6 + $0x80] sm:$0xff]
    %v93 = vld [vmem:[#allocation6 + $0x88] sm:$0xff]
    %v94 = vld [vmem:[#allocation6 + $0x90] sm:$0xff]
    %v95 = vld [vmem:[#allocation6 + $0x98] sm:$0xff]
    %v96 = vld [vmem:[#allocation6 + $0xa0] sm:$0xff]
    %v97 = vld [vmem:[#allocation6 + $0xa8] sm:$0xff]
    %v98 = vld [vmem:[#allocation6 + $0xb0] sm:$0xff]
    %v99 = vld [vmem:[#allocation6 + $0xb8] sm:$0xff]
    %v100 = vld [vmem:[#allocation6 + $0xc0] sm:$0xff]
    %v101 = vld [vmem:[#allocation6 + $0xc8] sm:$0xff]
    %v102 = vld [vmem:[#allocation6 + $0xd0] sm:$0xff]
    %v103 = vld [vmem:[#allocation6 + $0xd8] sm:$0xff]
    %v104 = vld [vmem:[#allocation6 + $0xe0] sm:$0xff]
    %v105 = vld [vmem:[#allocation6 + $0xe8] sm:$0xff]
    %v106 = vld [vmem:[#allocation6 + $0xf0] sm:$0xff]
    %v107 = vld [vmem:[#allocation6 + $0xf8] sm:$0xff]
    %v108 = vld [vmem:[#allocation6 + $0x100] sm:$0xff]
    %v109 = vld [vmem:[#allocation6 + $0x108] sm:$0xff]
    %v110 = vld [vmem:[#allocation6 + $0x110] sm:$0xff]
    %v111 = vld [vmem:[#allocation6 + $0x118] sm:$0xff]
    %v112 = vld [vmem:[#allocation6 + $0x120] sm:$0xff]
    %v113 = vld [vmem:[#allocation6 + $0x128] sm:$0xff]
    %v114 = vld [vmem:[#allocation6 + $0x130] sm:$0xff]
    %v115 = vld [vmem:[#allocation6 + $0x138] sm:$0xff]
    %v116 = vld [vmem:[#allocation6 + $0x140] sm:$0xff]
    %v117 = vld [vmem:[#allocation6 + $0x148] sm:$0xff]
    %v118 = vld [vmem:[#allocation6 + $0x150] sm:$0xff]
    %v119 = vld [vmem:[#allocation6 + $0x158] sm:$0xff]
    %v120 = vld [vmem:[#allocation6 + $0x160] sm:$0xff]
    %v121 = vld [vmem:[#allocation6 + $0x168] sm:$0xff]
    %v122 = vld [vmem:[#allocation6 + $0x170] sm:$0xff]
    %v123 = vld [vmem:[#allocation6 + $0x178] sm:$0xff]
    %v124 = vld [vmem:[#allocation6 + $0x180] sm:$0xff]
    %v125 = vld [vmem:[#allocation6 + $0x188] sm:$0xff]
    %v126 = vld [vmem:[#allocation6 + $0x190] sm:$0xff]
    %v127 = vld [vmem:[#allocation6 + $0x198] sm:$0xff]
    %v128 = vld [vmem:[#allocation6 + $0x1a0] sm:$0xff]
    %v129 = vld [vmem:[#allocation6 + $0x1a8] sm:$0xff]
    %v130 = vld [vmem:[#allocation6 + $0x1b0] sm:$0xff]
    %v131 = vld [vmem:[#allocation6 + $0x1b8] sm:$0xff]
    %v132 = vld [vmem:[#allocation6 + $0x1c0] sm:$0xff]
    %v133 = vld [vmem:[#allocation6 + $0x1c8] sm:$0xff]
    %v134 = vld [vmem:[#allocation6 + $0x1d0] sm:$0xff]
    %v135 = vld [vmem:[#allocation6 + $0x1d8] sm:$0xff]
    %v136 = vld [vmem:[#allocation6 + $0x1e0] sm:$0xff]
    %v137 = vld [vmem:[#allocation6 + $0x1e8] sm:$0xff]
    %v138 = vld [vmem:[#allocation6 + $0x1f0] sm:$0xff]
    %v139 = vld [vmem:[#allocation6 + $0x1f8] sm:$0xff]
    %v140 = vld [vmem:[#allocation6 + $0x200] sm:$0xff]
    %v141 = vld [vmem:[#allocation6 + $0x208] sm:$0xff]
    %v142 = vld [vmem:[#allocation6 + $0x210] sm:$0xff]
    %v143 = vld [vmem:[#allocation6 + $0x218] sm:$0xff]
    %v144 = vld [vmem:[#allocation6 + $0x220] sm:$0xff]
    %v145 = vld [vmem:[#allocation6 + $0x228] sm:$0xff]
    %v146 = vld [vmem:[#allocation6 + $0x230] sm:$0xff]
    %v147 = vld [vmem:[#allocation6 + $0x238] sm:$0xff]
    %v148 = vld [vmem:[#allocation6 + $0x240] sm:$0xff]
    %v149 = vld [vmem:[#allocation6 + $0x248] sm:$0xff]
    %v150 = vld [vmem:[#allocation6 + $0x250] sm:$0xff]
    %v151 = vld [vmem:[#allocation6 + $0x258] sm:$0xff]
    %v152 = vld [vmem:[#allocation6 + $0x260] sm:$0xff]
    %v153 = vld [vmem:[#allocation6 + $0x268] sm:$0xff]
    %v154 = vld [vmem:[#allocation6 + $0x270] sm:$0xff]
    %v155 = vld [vmem:[#allocation6 + $0x278] sm:$0xff]
    %v156 = vld [vmem:[#allocation6 + $0x280] sm:$0xff]
    %v157 = vld [vmem:[#allocation6 + $0x288] sm:$0xff]
    %v158 = vld [vmem:[#allocation6 + $0x290] sm:$0xff]
    %v159 = vld [vmem:[#allocation6 + $0x298] sm:$0xff]
    %v160 = vld [vmem:[#allocation6 + $0x2a0] sm:$0xff]
    %v161 = vld [vmem:[#allocation6 + $0x2a8] sm:$0xff]
    %v162 = vld [vmem:[#allocation6 + $0x2b0] sm:$0xff]
    %v163 = vld [vmem:[#allocation6 + $0x2b8] sm:$0xff]
    %v164 = vld [vmem:[#allocation6 + $0x2c0] sm:$0xff]
    %v165 = vld [vmem:[#allocation6 + $0x2c8] sm:$0xff]
    %v166 = vld [vmem:[#allocation6 + $0x2d0] sm:$0xff]
    %v167 = vld [vmem:[#allocation6 + $0x2d8] sm:$0xff]
    %v168 = vld [vmem:[#allocation6 + $0x2e0] sm:$0xff]
    %v169 = vld [vmem:[#allocation6 + $0x2e8] sm:$0xff]
    %v170 = vld [vmem:[#allocation6 + $0x2f0] sm:$0xff]
    %v171 = vld [vmem:[#allocation6 + $0x2f8] sm:$0xff]
    %v172 = vld [vmem:[#allocation6 + $0x300] sm:$0xff]
    %v173 = vld [vmem:[#allocation6 + $0x308] sm:$0xff]
    %v174 = vld [vmem:[#allocation6 + $0x310] sm:$0xff]
    %v175 = vld [vmem:[#allocation6 + $0x318] sm:$0xff]
    %v176 = vld [vmem:[#allocation6 + $0x320] sm:$0xff]
    %v177 = vld [vmem:[#allocation6 + $0x328] sm:$0xff]
    %v178 = vld [vmem:[#allocation6 + $0x330] sm:$0xff]
    %v179 = vld [vmem:[#allocation6 + $0x338] sm:$0xff]
    %v180 = vld [vmem:[#allocation6 + $0x340] sm:$0xff]
    %v181 = vld [vmem:[#allocation6 + $0x348] sm:$0xff]
    %v182 = vld [vmem:[#allocation6 + $0x350] sm:$0xff]
    %v183 = vld [vmem:[#allocation6 + $0x358] sm:$0xff]
    %v184 = vld [vmem:[#allocation6 + $0x360] sm:$0xff]
    %v185 = vld [vmem:[#allocation6 + $0x368] sm:$0xff]
    %v186 = vld [vmem:[#allocation6 + $0x370] sm:$0xff]
    %v187 = vld [vmem:[#allocation6 + $0x378] sm:$0xff]
    %v188 = vld [vmem:[#allocation6 + $0x380] sm:$0xff]
    %v189 = vld [vmem:[#allocation6 + $0x388] sm:$0xff]
    %v190 = vld [vmem:[#allocation6 + $0x390] sm:$0xff]
    %v191 = vld [vmem:[#allocation6 + $0x398] sm:$0xff]
    %v192 = vld [vmem:[#allocation6 + $0x3a0] sm:$0xff]
    %v193 = vld [vmem:[#allocation6 + $0x3a8] sm:$0xff]
    %v194 = vld [vmem:[#allocation6 + $0x3b0] sm:$0xff]
    %v195 = vld [vmem:[#allocation6 + $0x3b8] sm:$0xff]
    %v196 = vld [vmem:[#allocation6 + $0x3c0] sm:$0xff]
    %v197 = vld [vmem:[#allocation6 + $0x3c8] sm:$0xff]
    %v198 = vld [vmem:[#allocation6 + $0x3d0] sm:$0xff]
    %v199 = vld [vmem:[#allocation6 + $0x3d8] sm:$0xff]
    %v200 = vld [vmem:[#allocation6 + $0x3e0] sm:$0xff]
    %v201 = vld [vmem:[#allocation6 + $0x3e8] sm:$0xff]
    %v202 = vld [vmem:[#allocation6 + $0x3f0] sm:$0xff]
    %v203 = vld [vmem:[#allocation6 + $0x3f8] sm:$0xff]
    %v204 = vld [vmem:[%s2] sm:$0xf]
    %v206 = vlaneseq
    %v207 = vshrl.u32 %v206, 7
    %v208 = vsub.s32 0, %v207
    %v209 = vrot.slane %v204, %v208
    %v210 = vlaneseq
    %v211 = vshrl.u32 %v210, 7
    %v212 = vsub.s32 1, %v211
    %v213 = vrot.slane %v204, %v212
    %v214 = vlaneseq
    %v215 = vshrl.u32 %v214, 7
    %v216 = vsub.s32 2, %v215
    %v217 = vrot.slane %v204, %v216
    %v218 = vlaneseq
    %v219 = vshrl.u32 %v218, 7
    %v220 = vsub.s32 3, %v219
    %v221 = vrot.slane %v204, %v220
    %v354 = vunpack.c.l.b16 %v76
    %v355 = vunpack.c.h.b16 %v76
    %v356 = vunpack.c.l.b16 %v77
    %v357 = vunpack.c.h.b16 %v77
    %v358 = vunpack.c.l.b16 %v78
    %v359 = vunpack.c.h.b16 %v78
    %v360 = vunpack.c.l.b16 %v79
    %v361 = vunpack.c.h.b16 %v79
    %v362 = vunpack.c.l.b16 %v80
    %v363 = vunpack.c.h.b16 %v80
    %v364 = vunpack.c.l.b16 %v81
    %v365 = vunpack.c.h.b16 %v81
    %v366 = vunpack.c.l.b16 %v82
    %v367 = vunpack.c.h.b16 %v82
    %v368 = vunpack.c.l.b16 %v83
    %v369 = vunpack.c.h.b16 %v83
    %v370 = vunpack.c.l.b16 %v84
    %v371 = vunpack.c.h.b16 %v84
    %v372 = vunpack.c.l.b16 %v85
    %v373 = vunpack.c.h.b16 %v85
    %v374 = vunpack.c.l.b16 %v86
    %v375 = vunpack.c.h.b16 %v86
    %v376 = vunpack.c.l.b16 %v87
    %v377 = vunpack.c.h.b16 %v87
    %v378 = vunpack.c.l.b16 %v88
    %v379 = vunpack.c.h.b16 %v88
    %v380 = vunpack.c.l.b16 %v89
    %v381 = vunpack.c.h.b16 %v89
    %v382 = vunpack.c.l.b16 %v90
    %v383 = vunpack.c.h.b16 %v90
    %v384 = vunpack.c.l.b16 %v91
    %v385 = vunpack.c.h.b16 %v91
    %v386 = vunpack.c.l.b16 %v92
    %v387 = vunpack.c.h.b16 %v92
    %v388 = vunpack.c.l.b16 %v93
    %v389 = vunpack.c.h.b16 %v93
    %v390 = vunpack.c.l.b16 %v94
    %v391 = vunpack.c.h.b16 %v94
    %v392 = vunpack.c.l.b16 %v95
    %v393 = vunpack.c.h.b16 %v95
    %v394 = vunpack.c.l.b16 %v96
    %v395 = vunpack.c.h.b16 %v96
    %v396 = vunpack.c.l.b16 %v97
    %v397 = vunpack.c.h.b16 %v97
    %v398 = vunpack.c.l.b16 %v98
    %v399 = vunpack.c.h.b16 %v98
    %v400 = vunpack.c.l.b16 %v99
    %v401 = vunpack.c.h.b16 %v99
    %v402 = vunpack.c.l.b16 %v100
    %v403 = vunpack.c.h.b16 %v100
    %v404 = vunpack.c.l.b16 %v101
    %v405 = vunpack.c.h.b16 %v101
    %v406 = vunpack.c.l.b16 %v102
    %v407 = vunpack.c.h.b16 %v102
    %v408 = vunpack.c.l.b16 %v103
    %v409 = vunpack.c.h.b16 %v103
    %v410 = vunpack.c.l.b16 %v104
    %v411 = vunpack.c.h.b16 %v104
    %v412 = vunpack.c.l.b16 %v105
    %v413 = vunpack.c.h.b16 %v105
    %v414 = vunpack.c.l.b16 %v106
    %v415 = vunpack.c.h.b16 %v106
    %v416 = vunpack.c.l.b16 %v107
    %v417 = vunpack.c.h.b16 %v107
    %v418 = vunpack.c.l.b16 %v108
    %v419 = vunpack.c.h.b16 %v108
    %v420 = vunpack.c.l.b16 %v109
    %v421 = vunpack.c.h.b16 %v109
    %v422 = vunpack.c.l.b16 %v110
    %v423 = vunpack.c.h.b16 %v110
    %v424 = vunpack.c.l.b16 %v111
    %v425 = vunpack.c.h.b16 %v111
    %v426 = vunpack.c.l.b16 %v112
    %v427 = vunpack.c.h.b16 %v112
    %v428 = vunpack.c.l.b16 %v113
    %v429 = vunpack.c.h.b16 %v113
    %v430 = vunpack.c.l.b16 %v114
    %v431 = vunpack.c.h.b16 %v114
    %v432 = vunpack.c.l.b16 %v115
    %v433 = vunpack.c.h.b16 %v115
    %v434 = vunpack.c.l.b16 %v116
    %v435 = vunpack.c.h.b16 %v116
    %v436 = vunpack.c.l.b16 %v117
    %v437 = vunpack.c.h.b16 %v117
    %v438 = vunpack.c.l.b16 %v118
    %v439 = vunpack.c.h.b16 %v118
    %v440 = vunpack.c.l.b16 %v119
    %v441 = vunpack.c.h.b16 %v119
    %v442 = vunpack.c.l.b16 %v120
    %v443 = vunpack.c.h.b16 %v120
    %v444 = vunpack.c.l.b16 %v121
    %v445 = vunpack.c.h.b16 %v121
    %v446 = vunpack.c.l.b16 %v122
    %v447 = vunpack.c.h.b16 %v122
    %v448 = vunpack.c.l.b16 %v123
    %v449 = vunpack.c.h.b16 %v123
    %v450 = vunpack.c.l.b16 %v124
    %v451 = vunpack.c.h.b16 %v124
    %v452 = vunpack.c.l.b16 %v125
    %v453 = vunpack.c.h.b16 %v125
    %v454 = vunpack.c.l.b16 %v126
    %v455 = vunpack.c.h.b16 %v126
    %v456 = vunpack.c.l.b16 %v127
    %v457 = vunpack.c.h.b16 %v127
    %v458 = vunpack.c.l.b16 %v128
    %v459 = vunpack.c.h.b16 %v128
    %v460 = vunpack.c.l.b16 %v129
    %v461 = vunpack.c.h.b16 %v129
    %v462 = vunpack.c.l.b16 %v130
    %v463 = vunpack.c.h.b16 %v130
    %v464 = vunpack.c.l.b16 %v131
    %v465 = vunpack.c.h.b16 %v131
    %v466 = vunpack.c.l.b16 %v132
    %v467 = vunpack.c.h.b16 %v132
    %v468 = vunpack.c.l.b16 %v133
    %v469 = vunpack.c.h.b16 %v133
    %v470 = vunpack.c.l.b16 %v134
    %v471 = vunpack.c.h.b16 %v134
    %v472 = vunpack.c.l.b16 %v135
    %v473 = vunpack.c.h.b16 %v135
    %v474 = vunpack.c.l.b16 %v136
    %v475 = vunpack.c.h.b16 %v136
    %v476 = vunpack.c.l.b16 %v137
    %v477 = vunpack.c.h.b16 %v137
    %v478 = vunpack.c.l.b16 %v138
    %v479 = vunpack.c.h.b16 %v138
    %v480 = vunpack.c.l.b16 %v139
    %v481 = vunpack.c.h.b16 %v139
    %v482 = vunpack.c.l.b16 %v140
    %v483 = vunpack.c.h.b16 %v140
    %v484 = vunpack.c.l.b16 %v141
    %v485 = vunpack.c.h.b16 %v141
    %v486 = vunpack.c.l.b16 %v142
    %v487 = vunpack.c.h.b16 %v142
    %v488 = vunpack.c.l.b16 %v143
    %v489 = vunpack.c.h.b16 %v143
    %v490 = vunpack.c.l.b16 %v144
    %v491 = vunpack.c.h.b16 %v144
    %v492 = vunpack.c.l.b16 %v145
    %v493 = vunpack.c.h.b16 %v145
    %v494 = vunpack.c.l.b16 %v146
    %v495 = vunpack.c.h.b16 %v146
    %v496 = vunpack.c.l.b16 %v147
    %v497 = vunpack.c.h.b16 %v147
    %v498 = vunpack.c.l.b16 %v148
    %v499 = vunpack.c.h.b16 %v148
    %v500 = vunpack.c.l.b16 %v149
    %v501 = vunpack.c.h.b16 %v149
    %v502 = vunpack.c.l.b16 %v150
    %v503 = vunpack.c.h.b16 %v150
    %v504 = vunpack.c.l.b16 %v151
    %v505 = vunpack.c.h.b16 %v151
    %v506 = vunpack.c.l.b16 %v152
    %v507 = vunpack.c.h.b16 %v152
    %v508 = vunpack.c.l.b16 %v153
    %v509 = vunpack.c.h.b16 %v153
    %v510 = vunpack.c.l.b16 %v154
    %v511 = vunpack.c.h.b16 %v154
    %v512 = vunpack.c.l.b16 %v155
    %v513 = vunpack.c.h.b16 %v155
    %v514 = vunpack.c.l.b16 %v156
    %v515 = vunpack.c.h.b16 %v156
    %v516 = vunpack.c.l.b16 %v157
    %v517 = vunpack.c.h.b16 %v157
    %v518 = vunpack.c.l.b16 %v158
    %v519 = vunpack.c.h.b16 %v158
    %v520 = vunpack.c.l.b16 %v159
    %v521 = vunpack.c.h.b16 %v159
    %v522 = vunpack.c.l.b16 %v160
    %v523 = vunpack.c.h.b16 %v160
    %v524 = vunpack.c.l.b16 %v161
    %v525 = vunpack.c.h.b16 %v161
    %v526 = vunpack.c.l.b16 %v162
    %v527 = vunpack.c.h.b16 %v162
    %v528 = vunpack.c.l.b16 %v163
    %v529 = vunpack.c.h.b16 %v163
    %v530 = vunpack.c.l.b16 %v164
    %v531 = vunpack.c.h.b16 %v164
    %v532 = vunpack.c.l.b16 %v165
    %v533 = vunpack.c.h.b16 %v165
    %v534 = vunpack.c.l.b16 %v166
    %v535 = vunpack.c.h.b16 %v166
    %v536 = vunpack.c.l.b16 %v167
    %v537 = vunpack.c.h.b16 %v167
    %v538 = vunpack.c.l.b16 %v168
    %v539 = vunpack.c.h.b16 %v168
    %v540 = vunpack.c.l.b16 %v169
    %v541 = vunpack.c.h.b16 %v169
    %v542 = vunpack.c.l.b16 %v170
    %v543 = vunpack.c.h.b16 %v170
    %v544 = vunpack.c.l.b16 %v171
    %v545 = vunpack.c.h.b16 %v171
    %v546 = vunpack.c.l.b16 %v172
    %v547 = vunpack.c.h.b16 %v172
    %v548 = vunpack.c.l.b16 %v173
    %v549 = vunpack.c.h.b16 %v173
    %v550 = vunpack.c.l.b16 %v174
    %v551 = vunpack.c.h.b16 %v174
    %v552 = vunpack.c.l.b16 %v175
    %v553 = vunpack.c.h.b16 %v175
    %v554 = vunpack.c.l.b16 %v176
    %v555 = vunpack.c.h.b16 %v176
    %v556 = vunpack.c.l.b16 %v177
    %v557 = vunpack.c.h.b16 %v177
    %v558 = vunpack.c.l.b16 %v178
    %v559 = vunpack.c.h.b16 %v178
    %v560 = vunpack.c.l.b16 %v179
    %v561 = vunpack.c.h.b16 %v179
    %v562 = vunpack.c.l.b16 %v180
    %v563 = vunpack.c.h.b16 %v180
    %v564 = vunpack.c.l.b16 %v181
    %v565 = vunpack.c.h.b16 %v181
    %v566 = vunpack.c.l.b16 %v182
    %v567 = vunpack.c.h.b16 %v182
    %v568 = vunpack.c.l.b16 %v183
    %v569 = vunpack.c.h.b16 %v183
    %v570 = vunpack.c.l.b16 %v184
    %v571 = vunpack.c.h.b16 %v184
    %v572 = vunpack.c.l.b16 %v185
    %v573 = vunpack.c.h.b16 %v185
    %v574 = vunpack.c.l.b16 %v186
    %v575 = vunpack.c.h.b16 %v186
    %v576 = vunpack.c.l.b16 %v187
    %v577 = vunpack.c.h.b16 %v187
    %v578 = vunpack.c.l.b16 %v188
    %v579 = vunpack.c.h.b16 %v188
    %v580 = vunpack.c.l.b16 %v189
    %v581 = vunpack.c.h.b16 %v189
    %v582 = vunpack.c.l.b16 %v190
    %v583 = vunpack.c.h.b16 %v190
    %v584 = vunpack.c.l.b16 %v191
    %v585 = vunpack.c.h.b16 %v191
    %v586 = vunpack.c.l.b16 %v192
    %v587 = vunpack.c.h.b16 %v192
    %v588 = vunpack.c.l.b16 %v193
    %v589 = vunpack.c.h.b16 %v193
    %v590 = vunpack.c.l.b16 %v194
    %v591 = vunpack.c.h.b16 %v194
    %v592 = vunpack.c.l.b16 %v195
    %v593 = vunpack.c.h.b16 %v195
    %v594 = vunpack.c.l.b16 %v196
    %v595 = vunpack.c.h.b16 %v196
    %v596 = vunpack.c.l.b16 %v197
    %v597 = vunpack.c.h.b16 %v197
    %v598 = vunpack.c.l.b16 %v198
    %v599 = vunpack.c.h.b16 %v198
    %v600 = vunpack.c.l.b16 %v199
    %v601 = vunpack.c.h.b16 %v199
    %v602 = vunpack.c.l.b16 %v200
    %v603 = vunpack.c.h.b16 %v200
    %v604 = vunpack.c.l.b16 %v201
    %v605 = vunpack.c.h.b16 %v201
    %v606 = vunpack.c.l.b16 %v202
    %v607 = vunpack.c.h.b16 %v202
    %v608 = vunpack.c.l.b16 %v203
    %v609 = vunpack.c.h.b16 %v203
    %v610 = vpack.c.b16 %v358, %v354
    %v611 = vpack.c.b16 %v359, %v355
    %v612 = vpack.c.b16 %v360, %v356
    %v613 = vpack.c.b16 %v361, %v357
    %v614 = vpack.c.b16 %v366, %v362
    %v615 = vpack.c.b16 %v367, %v363
    %v616 = vpack.c.b16 %v368, %v364
    %v617 = vpack.c.b16 %v369, %v365
    %v618 = vpack.c.b16 %v374, %v370
    %v619 = vpack.c.b16 %v375, %v371
    %v620 = vpack.c.b16 %v376, %v372
    %v621 = vpack.c.b16 %v377, %v373
    %v622 = vpack.c.b16 %v382, %v378
    %v623 = vpack.c.b16 %v383, %v379
    %v624 = vpack.c.b16 %v384, %v380
    %v625 = vpack.c.b16 %v385, %v381
    %v626 = vpack.c.b16 %v390, %v386
    %v627 = vpack.c.b16 %v391, %v387
    %v628 = vpack.c.b16 %v392, %v388
    %v629 = vpack.c.b16 %v393, %v389
    %v630 = vpack.c.b16 %v398, %v394
    %v631 = vpack.c.b16 %v399, %v395
    %v632 = vpack.c.b16 %v400, %v396
    %v633 = vpack.c.b16 %v401, %v397
    %v634 = vpack.c.b16 %v406, %v402
    %v635 = vpack.c.b16 %v407, %v403
    %v636 = vpack.c.b16 %v408, %v404
    %v637 = vpack.c.b16 %v409, %v405
    %v638 = vpack.c.b16 %v414, %v410
    %v639 = vpack.c.b16 %v415, %v411
    %v640 = vpack.c.b16 %v416, %v412
    %v641 = vpack.c.b16 %v417, %v413
    %v642 = vpack.c.b16 %v422, %v418
    %v643 = vpack.c.b16 %v423, %v419
    %v644 = vpack.c.b16 %v424, %v420
    %v645 = vpack.c.b16 %v425, %v421
    %v646 = vpack.c.b16 %v430, %v426
    %v647 = vpack.c.b16 %v431, %v427
    %v648 = vpack.c.b16 %v432, %v428
    %v649 = vpack.c.b16 %v433, %v429
    %v650 = vpack.c.b16 %v438, %v434
    %v651 = vpack.c.b16 %v439, %v435
    %v652 = vpack.c.b16 %v440, %v436
    %v653 = vpack.c.b16 %v441, %v437
    %v654 = vpack.c.b16 %v446, %v442
    %v655 = vpack.c.b16 %v447, %v443
    %v656 = vpack.c.b16 %v448, %v444
    %v657 = vpack.c.b16 %v449, %v445
    %v658 = vpack.c.b16 %v454, %v450
    %v659 = vpack.c.b16 %v455, %v451
    %v660 = vpack.c.b16 %v456, %v452
    %v661 = vpack.c.b16 %v457, %v453
    %v662 = vpack.c.b16 %v462, %v458
    %v663 = vpack.c.b16 %v463, %v459
    %v664 = vpack.c.b16 %v464, %v460
    %v665 = vpack.c.b16 %v465, %v461
    %v666 = vpack.c.b16 %v470, %v466
    %v667 = vpack.c.b16 %v471, %v467
    %v668 = vpack.c.b16 %v472, %v468
    %v669 = vpack.c.b16 %v473, %v469
    %v670 = vpack.c.b16 %v478, %v474
    %v671 = vpack.c.b16 %v479, %v475
    %v672 = vpack.c.b16 %v480, %v476
    %v673 = vpack.c.b16 %v481, %v477
    %v674 = vpack.c.b16 %v486, %v482
    %v675 = vpack.c.b16 %v487, %v483
    %v676 = vpack.c.b16 %v488, %v484
    %v677 = vpack.c.b16 %v489, %v485
    %v678 = vpack.c.b16 %v494, %v490
    %v679 = vpack.c.b16 %v495, %v491
    %v680 = vpack.c.b16 %v496, %v492
    %v681 = vpack.c.b16 %v497, %v493
    %v682 = vpack.c.b16 %v502, %v498
    %v683 = vpack.c.b16 %v503, %v499
    %v684 = vpack.c.b16 %v504, %v500
    %v685 = vpack.c.b16 %v505, %v501
    %v686 = vpack.c.b16 %v510, %v506
    %v687 = vpack.c.b16 %v511, %v507
    %v688 = vpack.c.b16 %v512, %v508
    %v689 = vpack.c.b16 %v513, %v509
    %v690 = vpack.c.b16 %v518, %v514
    %v691 = vpack.c.b16 %v519, %v515
    %v692 = vpack.c.b16 %v520, %v516
    %v693 = vpack.c.b16 %v521, %v517
    %v694 = vpack.c.b16 %v526, %v522
    %v695 = vpack.c.b16 %v527, %v523
    %v696 = vpack.c.b16 %v528, %v524
    %v697 = vpack.c.b16 %v529, %v525
    %v698 = vpack.c.b16 %v534, %v530
    %v699 = vpack.c.b16 %v535, %v531
    %v700 = vpack.c.b16 %v536, %v532
    %v701 = vpack.c.b16 %v537, %v533
    %v702 = vpack.c.b16 %v542, %v538
    %v703 = vpack.c.b16 %v543, %v539
    %v704 = vpack.c.b16 %v544, %v540
    %v705 = vpack.c.b16 %v545, %v541
    %v706 = vpack.c.b16 %v550, %v546
    %v707 = vpack.c.b16 %v551, %v547
    %v708 = vpack.c.b16 %v552, %v548
    %v709 = vpack.c.b16 %v553, %v549
    %v710 = vpack.c.b16 %v558, %v554
    %v711 = vpack.c.b16 %v559, %v555
    %v712 = vpack.c.b16 %v560, %v556
    %v713 = vpack.c.b16 %v561, %v557
    %v714 = vpack.c.b16 %v566, %v562
    %v715 = vpack.c.b16 %v567, %v563
    %v716 = vpack.c.b16 %v568, %v564
    %v717 = vpack.c.b16 %v569, %v565
    %v718 = vpack.c.b16 %v574, %v570
    %v719 = vpack.c.b16 %v575, %v571
    %v720 = vpack.c.b16 %v576, %v572
    %v721 = vpack.c.b16 %v577, %v573
    %v722 = vpack.c.b16 %v582, %v578
    %v723 = vpack.c.b16 %v583, %v579
    %v724 = vpack.c.b16 %v584, %v580
    %v725 = vpack.c.b16 %v585, %v581
    %v726 = vpack.c.b16 %v590, %v586
    %v727 = vpack.c.b16 %v591, %v587
    %v728 = vpack.c.b16 %v592, %v588
    %v729 = vpack.c.b16 %v593, %v589
    %v730 = vpack.c.b16 %v598, %v594
    %v731 = vpack.c.b16 %v599, %v595
    %v732 = vpack.c.b16 %v600, %v596
    %v733 = vpack.c.b16 %v601, %v597
    %v734 = vpack.c.b16 %v606, %v602
    %v735 = vpack.c.b16 %v607, %v603
    %v736 = vpack.c.b16 %v608, %v604
    %v737 = vpack.c.b16 %v609, %v605
    %866 = vmatprep.subr.bf16.mxu0 %v639
    %867 = vmatpush1.bf16.msra.mxu0 %v638
    %868 = vmatprep.subr.bf16.mxu0 %v635
    %869 = vmatpush1.bf16.msra.mxu0 %v634
    %870 = vmatprep.subr.bf16.mxu0 %v631
    %871 = vmatpush1.bf16.msra.mxu0 %v630
    %872 = vmatprep.subr.bf16.mxu0 %v627
    %873 = vmatpush1.bf16.msra.mxu0 %v626
    %874 = vmatprep.subr.bf16.mxu0 %v623
    %875 = vmatpush1.bf16.msra.mxu0 %v622
    %876 = vmatprep.subr.bf16.mxu0 %v619
    %877 = vmatpush1.bf16.msra.mxu0 %v618
    %878 = vmatprep.subr.bf16.mxu0 %v615
    %879 = vmatpush1.bf16.msra.mxu0 %v614
    %880 = vmatprep.subr.bf16.mxu0 %v611
    %881 = vmatpush1.bf16.msra.mxu0 %v610
    %882 = vmatprep.subr.bf16.mxu0 %v671
    %883 = vmatpush2.bf16.msra.mxu0 %v670
    %884 = vmatprep.subr.bf16.mxu0 %v667
    %885 = vmatpush2.bf16.msra.mxu0 %v666
    %886 = vmatprep.subr.bf16.mxu0 %v663
    %887 = vmatpush2.bf16.msra.mxu0 %v662
    %888 = vmatprep.subr.bf16.mxu0 %v659
    %889 = vmatpush2.bf16.msra.mxu0 %v658
    %890 = vmatprep.subr.bf16.mxu0 %v655
    %891 = vmatpush2.bf16.msra.mxu0 %v654
    %892 = vmatprep.subr.bf16.mxu0 %v651
    %893 = vmatpush2.bf16.msra.mxu0 %v650
    %894 = vmatprep.subr.bf16.mxu0 %v647
    %895 = vmatpush2.bf16.msra.mxu0 %v646
    %896 = vmatprep.subr.bf16.mxu0 %v643
    %897 = vmatpush2.bf16.msra.mxu0 %v642
    %898 = vmatprep.mubr.bf16.mxu0 %v73
    %899 = vmatmul.mubr.bf16.gmra.mxu0 %v72
    %v900 = vpop.f32.mrf.mxu0
    %v901 = vadd.f32 %v209, %v900
    %v902 = vpop.f32.mrf.mxu0
    %v903 = vadd.f32 %v213, %v902
    %v904 = vpop.f32.mrf.mxu0
    %v905 = vpop.f32.mrf.mxu0
    %906 = vdwg.mxu0
    %907 = vmatprep.subr.bf16.mxu0 %v703
    %908 = vmatpush1.bf16.msra.mxu0 %v702
    %909 = vmatprep.subr.bf16.mxu0 %v699
    %910 = vmatpush1.bf16.msra.mxu0 %v698
    %911 = vmatprep.subr.bf16.mxu0 %v695
    %912 = vmatpush1.bf16.msra.mxu0 %v694
    %913 = vmatprep.subr.bf16.mxu0 %v691
    %914 = vmatpush1.bf16.msra.mxu0 %v690
    %915 = vmatprep.subr.bf16.mxu0 %v687
    %916 = vmatpush1.bf16.msra.mxu0 %v686
    %917 = vmatprep.subr.bf16.mxu0 %v683
    %918 = vmatpush1.bf16.msra.mxu0 %v682
    %919 = vmatprep.subr.bf16.mxu0 %v679
    %920 = vmatpush1.bf16.msra.mxu0 %v678
    %921 = vmatprep.subr.bf16.mxu0 %v675
    %922 = vmatpush1.bf16.msra.mxu0 %v674
    %923 = vmatprep.subr.bf16.mxu0 %v735
    %924 = vmatpush2.bf16.msra.mxu0 %v734
    %925 = vmatprep.subr.bf16.mxu0 %v731
    %926 = vmatpush2.bf16.msra.mxu0 %v730
    %927 = vmatprep.subr.bf16.mxu0 %v727
    %928 = vmatpush2.bf16.msra.mxu0 %v726
    %929 = vmatprep.subr.bf16.mxu0 %v723
    %930 = vmatpush2.bf16.msra.mxu0 %v722
    %931 = vmatprep.subr.bf16.mxu0 %v719
    %932 = vmatpush2.bf16.msra.mxu0 %v718
    %933 = vmatprep.subr.bf16.mxu0 %v715
    %934 = vmatpush2.bf16.msra.mxu0 %v714
    %935 = vmatprep.subr.bf16.mxu0 %v711
    %936 = vmatpush2.bf16.msra.mxu0 %v710
    %937 = vmatprep.subr.bf16.mxu0 %v707
    %938 = vmatpush2.bf16.msra.mxu0 %v706
    %939 = vmatprep.mubr.bf16.mxu0 %v75
    %940 = vmatmul.mubr.bf16.gmra.mxu0 %v74
    %v941 = vpop.f32.mrf.mxu0
    %v942 = vadd.f32 %v901, %v941
    %v943 = vpop.f32.mrf.mxu0
    %v944 = vadd.f32 %v903, %v943
    %v945 = vpop.f32.mrf.mxu0
    %v946 = vpop.f32.mrf.mxu0
    %947 = vdwg.mxu0
    %948 = vmatprep.subr.bf16.mxu0 %v641
    %949 = vmatpush1.bf16.msra.mxu0 %v640
    %950 = vmatprep.subr.bf16.mxu0 %v637
    %951 = vmatpush1.bf16.msra.mxu0 %v636
    %952 = vmatprep.subr.bf16.mxu0 %v633
    %953 = vmatpush1.bf16.msra.mxu0 %v632
    %954 = vmatprep.subr.bf16.mxu0 %v629
    %955 = vmatpush1.bf16.msra.mxu0 %v628
    %956 = vmatprep.subr.bf16.mxu0 %v625
    %957 = vmatpush1.bf16.msra.mxu0 %v624
    %958 = vmatprep.subr.bf16.mxu0 %v621
    %959 = vmatpush1.bf16.msra.mxu0 %v620
    %960 = vmatprep.subr.bf16.mxu0 %v617
    %961 = vmatpush1.bf16.msra.mxu0 %v616
    %962 = vmatprep.subr.bf16.mxu0 %v613
    %963 = vmatpush1.bf16.msra.mxu0 %v612
    %964 = vmatprep.subr.bf16.mxu0 %v673
    %965 = vmatpush2.bf16.msra.mxu0 %v672
    %966 = vmatprep.subr.bf16.mxu0 %v669
    %967 = vmatpush2.bf16.msra.mxu0 %v668
    %968 = vmatprep.subr.bf16.mxu0 %v665
    %969 = vmatpush2.bf16.msra.mxu0 %v664
    %970 = vmatprep.subr.bf16.mxu0 %v661
    %971 = vmatpush2.bf16.msra.mxu0 %v660
    %972 = vmatprep.subr.bf16.mxu0 %v657
    %973 = vmatpush2.bf16.msra.mxu0 %v656
    %974 = vmatprep.subr.bf16.mxu0 %v653
    %975 = vmatpush2.bf16.msra.mxu0 %v652
    %976 = vmatprep.subr.bf16.mxu0 %v649
    %977 = vmatpush2.bf16.msra.mxu0 %v648
    %978 = vmatprep.subr.bf16.mxu0 %v645
    %979 = vmatpush2.bf16.msra.mxu0 %v644
    %980 = vmatprep.mubr.bf16.mxu0 %v73
    %981 = vmatmul.mubr.bf16.gmra.mxu0 %v72
    %v982 = vpop.f32.mrf.mxu0
    %v983 = vadd.f32 %v217, %v982
    %v984 = vpop.f32.mrf.mxu0
    %v985 = vadd.f32 %v221, %v984
    %v986 = vpop.f32.mrf.mxu0
    %v987 = vpop.f32.mrf.mxu0
    %988 = vdwg.mxu0
    %989 = vmatprep.subr.bf16.mxu0 %v705
    %990 = vmatpush1.bf16.msra.mxu0 %v704
    %991 = vmatprep.subr.bf16.mxu0 %v701
    %992 = vmatpush1.bf16.msra.mxu0 %v700
    %993 = vmatprep.subr.bf16.mxu0 %v697
    %994 = vmatpush1.bf16.msra.mxu0 %v696
    %995 = vmatprep.subr.bf16.mxu0 %v693
    %996 = vmatpush1.bf16.msra.mxu0 %v692
    %997 = vmatprep.subr.bf16.mxu0 %v689
    %998 = vmatpush1.bf16.msra.mxu0 %v688
    %999 = vmatprep.subr.bf16.mxu0 %v685
    %1000 = vmatpush1.bf16.msra.mxu0 %v684
    %1001 = vmatprep.subr.bf16.mxu0 %v681
    %1002 = vmatpush1.bf16.msra.mxu0 %v680
    %1003 = vmatprep.subr.bf16.mxu0 %v677
    %1004 = vmatpush1.bf16.msra.mxu0 %v676
    %1005 = vmatprep.subr.bf16.mxu0 %v737
    %1006 = vmatpush2.bf16.msra.mxu0 %v736
    %1007 = vmatprep.subr.bf16.mxu0 %v733
    %1008 = vmatpush2.bf16.msra.mxu0 %v732
    %1009 = vmatprep.subr.bf16.mxu0 %v729
    %1010 = vmatpush2.bf16.msra.mxu0 %v728
    %1011 = vmatprep.subr.bf16.mxu0 %v725
    %1012 = vmatpush2.bf16.msra.mxu0 %v724
    %1013 = vmatprep.subr.bf16.mxu0 %v721
    %1014 = vmatpush2.bf16.msra.mxu0 %v720
    %1015 = vmatprep.subr.bf16.mxu0 %v717
    %1016 = vmatpush2.bf16.msra.mxu0 %v716
    %1017 = vmatprep.subr.bf16.mxu0 %v713
    %1018 = vmatpush2.bf16.msra.mxu0 %v712
    %1019 = vmatprep.subr.bf16.mxu0 %v709
    %1020 = vmatpush2.bf16.msra.mxu0 %v708
    %1021 = vmatprep.mubr.bf16.mxu0 %v75
    %1022 = vmatmul.mubr.bf16.gmra.mxu0 %v74
    %v1023 = vpop.f32.mrf.mxu0
    %v1024 = vadd.f32 %v983, %v1023
    %v1025 = vpop.f32.mrf.mxu0
    %v1026 = vadd.f32 %v985, %v1025
    %v1027 = vpop.f32.mrf.mxu0
    %v1028 = vpop.f32.mrf.mxu0
    %1029 = vdwg.mxu0
    %v1030 = vmax.f32 %v942, 0.0
    %v1031 = vmax.f32 %v944, 0.0
    %v1032 = vmax.f32 %v1024, 0.0
    %v1033 = vmax.f32 %v1026, 0.0
    %v1034 = vpack.c.bf16 %v1030, %v1030
    %v1035 = vpack.c.bf16 %v1031, %v1031
    %v1036 = vpack.c.bf16 %v1032, %v1032
    %v1037 = vpack.c.bf16 %v1033, %v1033
    %v1038 = vld [vmem:[#allocation8] sm:$0xff]
    %v1039 = vld [vmem:[#allocation8 + $0x8] sm:$0xff]
    %v1040 = vld [vmem:[#allocation8 + $0x10] sm:$0xff]
    %v1041 = vld [vmem:[#allocation8 + $0x18] sm:$0xff]
    %v1042 = vld [vmem:[#allocation8 + $0x20] sm:$0xff]
    %v1043 = vld [vmem:[#allocation8 + $0x28] sm:$0xff]
    %v1044 = vld [vmem:[#allocation8 + $0x30] sm:$0xff]
    %v1045 = vld [vmem:[#allocation8 + $0x38] sm:$0xff]
    %v1046 = vld [vmem:[#allocation8 + $0x40] sm:$0xff]
    %v1047 = vld [vmem:[#allocation8 + $0x48] sm:$0xff]
    %v1048 = vld [vmem:[#allocation8 + $0x50] sm:$0xff]
    %v1049 = vld [vmem:[#allocation8 + $0x58] sm:$0xff]
    %v1050 = vld [vmem:[#allocation8 + $0x60] sm:$0xff]
    %v1051 = vld [vmem:[#allocation8 + $0x68] sm:$0xff]
    %v1052 = vld [vmem:[#allocation8 + $0x70] sm:$0xff]
    %v1053 = vld [vmem:[#allocation8 + $0x78] sm:$0xff]
    %v1054 = vld [vmem:[#allocation8 + $0x80] sm:$0xff]
    %v1055 = vld [vmem:[#allocation8 + $0x88] sm:$0xff]
    %v1056 = vld [vmem:[#allocation8 + $0x90] sm:$0xff]
    %v1057 = vld [vmem:[#allocation8 + $0x98] sm:$0xff]
    %v1058 = vld [vmem:[#allocation8 + $0xa0] sm:$0xff]
    %v1059 = vld [vmem:[#allocation8 + $0xa8] sm:$0xff]
    %v1060 = vld [vmem:[#allocation8 + $0xb0] sm:$0xff]
    %v1061 = vld [vmem:[#allocation8 + $0xb8] sm:$0xff]
    %v1062 = vld [vmem:[#allocation8 + $0xc0] sm:$0xff]
    %v1063 = vld [vmem:[#allocation8 + $0xc8] sm:$0xff]
    %v1064 = vld [vmem:[#allocation8 + $0xd0] sm:$0xff]
    %v1065 = vld [vmem:[#allocation8 + $0xd8] sm:$0xff]
    %v1066 = vld [vmem:[#allocation8 + $0xe0] sm:$0xff]
    %v1067 = vld [vmem:[#allocation8 + $0xe8] sm:$0xff]
    %v1068 = vld [vmem:[#allocation8 + $0xf0] sm:$0xff]
    %v1069 = vld [vmem:[#allocation8 + $0xf8] sm:$0xff]
    %v1070 = vld [vmem:[#allocation8 + $0x100] sm:$0xff]
    %v1071 = vld [vmem:[#allocation8 + $0x108] sm:$0xff]
    %v1072 = vld [vmem:[#allocation8 + $0x110] sm:$0xff]
    %v1073 = vld [vmem:[#allocation8 + $0x118] sm:$0xff]
    %v1074 = vld [vmem:[#allocation8 + $0x120] sm:$0xff]
    %v1075 = vld [vmem:[#allocation8 + $0x128] sm:$0xff]
    %v1076 = vld [vmem:[#allocation8 + $0x130] sm:$0xff]
    %v1077 = vld [vmem:[#allocation8 + $0x138] sm:$0xff]
    %v1078 = vld [vmem:[#allocation8 + $0x140] sm:$0xff]
    %v1079 = vld [vmem:[#allocation8 + $0x148] sm:$0xff]
    %v1080 = vld [vmem:[#allocation8 + $0x150] sm:$0xff]
    %v1081 = vld [vmem:[#allocation8 + $0x158] sm:$0xff]
    %v1082 = vld [vmem:[#allocation8 + $0x160] sm:$0xff]
    %v1083 = vld [vmem:[#allocation8 + $0x168] sm:$0xff]
    %v1084 = vld [vmem:[#allocation8 + $0x170] sm:$0xff]
    %v1085 = vld [vmem:[#allocation8 + $0x178] sm:$0xff]
    %v1086 = vld [vmem:[#allocation8 + $0x180] sm:$0xff]
    %v1087 = vld [vmem:[#allocation8 + $0x188] sm:$0xff]
    %v1088 = vld [vmem:[#allocation8 + $0x190] sm:$0xff]
    %v1089 = vld [vmem:[#allocation8 + $0x198] sm:$0xff]
    %v1090 = vld [vmem:[#allocation8 + $0x1a0] sm:$0xff]
    %v1091 = vld [vmem:[#allocation8 + $0x1a8] sm:$0xff]
    %v1092 = vld [vmem:[#allocation8 + $0x1b0] sm:$0xff]
    %v1093 = vld [vmem:[#allocation8 + $0x1b8] sm:$0xff]
    %v1094 = vld [vmem:[#allocation8 + $0x1c0] sm:$0xff]
    %v1095 = vld [vmem:[#allocation8 + $0x1c8] sm:$0xff]
    %v1096 = vld [vmem:[#allocation8 + $0x1d0] sm:$0xff]
    %v1097 = vld [vmem:[#allocation8 + $0x1d8] sm:$0xff]
    %v1098 = vld [vmem:[#allocation8 + $0x1e0] sm:$0xff]
    %v1099 = vld [vmem:[#allocation8 + $0x1e8] sm:$0xff]
    %v1100 = vld [vmem:[#allocation8 + $0x1f0] sm:$0xff]
    %v1101 = vld [vmem:[#allocation8 + $0x1f8] sm:$0xff]
    %v1102 = vld [vmem:[%s4] sm:$0x3]
    %v1104 = vlaneseq
    %v1105 = vshrl.u32 %v1104, 7
    %v1106 = vsub.s32 0, %v1105
    %v1107 = vrot.slane %v1102, %v1106
    %v1108 = vlaneseq
    %v1109 = vshrl.u32 %v1108, 7
    %v1110 = vsub.s32 1, %v1109
    %v1111 = vrot.slane %v1102, %v1110
    %v1178 = vunpack.c.l.b16 %v1038
    %v1179 = vunpack.c.h.b16 %v1038
    %v1180 = vunpack.c.l.b16 %v1039
    %v1181 = vunpack.c.h.b16 %v1039
    %v1182 = vunpack.c.l.b16 %v1040
    %v1183 = vunpack.c.h.b16 %v1040
    %v1184 = vunpack.c.l.b16 %v1041
    %v1185 = vunpack.c.h.b16 %v1041
    %v1186 = vunpack.c.l.b16 %v1042
    %v1187 = vunpack.c.h.b16 %v1042
    %v1188 = vunpack.c.l.b16 %v1043
    %v1189 = vunpack.c.h.b16 %v1043
    %v1190 = vunpack.c.l.b16 %v1044
    %v1191 = vunpack.c.h.b16 %v1044
    %v1192 = vunpack.c.l.b16 %v1045
    %v1193 = vunpack.c.h.b16 %v1045
    %v1194 = vunpack.c.l.b16 %v1046
    %v1195 = vunpack.c.h.b16 %v1046
    %v1196 = vunpack.c.l.b16 %v1047
    %v1197 = vunpack.c.h.b16 %v1047
    %v1198 = vunpack.c.l.b16 %v1048
    %v1199 = vunpack.c.h.b16 %v1048
    %v1200 = vunpack.c.l.b16 %v1049
    %v1201 = vunpack.c.h.b16 %v1049
    %v1202 = vunpack.c.l.b16 %v1050
    %v1203 = vunpack.c.h.b16 %v1050
    %v1204 = vunpack.c.l.b16 %v1051
    %v1205 = vunpack.c.h.b16 %v1051
    %v1206 = vunpack.c.l.b16 %v1052
    %v1207 = vunpack.c.h.b16 %v1052
    %v1208 = vunpack.c.l.b16 %v1053
    %v1209 = vunpack.c.h.b16 %v1053
    %v1210 = vunpack.c.l.b16 %v1054
    %v1211 = vunpack.c.h.b16 %v1054
    %v1212 = vunpack.c.l.b16 %v1055
    %v1213 = vunpack.c.h.b16 %v1055
    %v1214 = vunpack.c.l.b16 %v1056
    %v1215 = vunpack.c.h.b16 %v1056
    %v1216 = vunpack.c.l.b16 %v1057
    %v1217 = vunpack.c.h.b16 %v1057
    %v1218 = vunpack.c.l.b16 %v1058
    %v1219 = vunpack.c.h.b16 %v1058
    %v1220 = vunpack.c.l.b16 %v1059
    %v1221 = vunpack.c.h.b16 %v1059
    %v1222 = vunpack.c.l.b16 %v1060
    %v1223 = vunpack.c.h.b16 %v1060
    %v1224 = vunpack.c.l.b16 %v1061
    %v1225 = vunpack.c.h.b16 %v1061
    %v1226 = vunpack.c.l.b16 %v1062
    %v1227 = vunpack.c.h.b16 %v1062
    %v1228 = vunpack.c.l.b16 %v1063
    %v1229 = vunpack.c.h.b16 %v1063
    %v1230 = vunpack.c.l.b16 %v1064
    %v1231 = vunpack.c.h.b16 %v1064
    %v1232 = vunpack.c.l.b16 %v1065
    %v1233 = vunpack.c.h.b16 %v1065
    %v1234 = vunpack.c.l.b16 %v1066
    %v1235 = vunpack.c.h.b16 %v1066
    %v1236 = vunpack.c.l.b16 %v1067
    %v1237 = vunpack.c.h.b16 %v1067
    %v1238 = vunpack.c.l.b16 %v1068
    %v1239 = vunpack.c.h.b16 %v1068
    %v1240 = vunpack.c.l.b16 %v1069
    %v1241 = vunpack.c.h.b16 %v1069
    %v1242 = vunpack.c.l.b16 %v1070
    %v1243 = vunpack.c.h.b16 %v1070
    %v1244 = vunpack.c.l.b16 %v1071
    %v1245 = vunpack.c.h.b16 %v1071
    %v1246 = vunpack.c.l.b16 %v1072
    %v1247 = vunpack.c.h.b16 %v1072
    %v1248 = vunpack.c.l.b16 %v1073
    %v1249 = vunpack.c.h.b16 %v1073
    %v1250 = vunpack.c.l.b16 %v1074
    %v1251 = vunpack.c.h.b16 %v1074
    %v1252 = vunpack.c.l.b16 %v1075
    %v1253 = vunpack.c.h.b16 %v1075
    %v1254 = vunpack.c.l.b16 %v1076
    %v1255 = vunpack.c.h.b16 %v1076
    %v1256 = vunpack.c.l.b16 %v1077
    %v1257 = vunpack.c.h.b16 %v1077
    %v1258 = vunpack.c.l.b16 %v1078
    %v1259 = vunpack.c.h.b16 %v1078
    %v1260 = vunpack.c.l.b16 %v1079
    %v1261 = vunpack.c.h.b16 %v1079
    %v1262 = vunpack.c.l.b16 %v1080
    %v1263 = vunpack.c.h.b16 %v1080
    %v1264 = vunpack.c.l.b16 %v1081
    %v1265 = vunpack.c.h.b16 %v1081
    %v1266 = vunpack.c.l.b16 %v1082
    %v1267 = vunpack.c.h.b16 %v1082
    %v1268 = vunpack.c.l.b16 %v1083
    %v1269 = vunpack.c.h.b16 %v1083
    %v1270 = vunpack.c.l.b16 %v1084
    %v1271 = vunpack.c.h.b16 %v1084
    %v1272 = vunpack.c.l.b16 %v1085
    %v1273 = vunpack.c.h.b16 %v1085
    %v1274 = vunpack.c.l.b16 %v1086
    %v1275 = vunpack.c.h.b16 %v1086
    %v1276 = vunpack.c.l.b16 %v1087
    %v1277 = vunpack.c.h.b16 %v1087
    %v1278 = vunpack.c.l.b16 %v1088
    %v1279 = vunpack.c.h.b16 %v1088
    %v1280 = vunpack.c.l.b16 %v1089
    %v1281 = vunpack.c.h.b16 %v1089
    %v1282 = vunpack.c.l.b16 %v1090
    %v1283 = vunpack.c.h.b16 %v1090
    %v1284 = vunpack.c.l.b16 %v1091
    %v1285 = vunpack.c.h.b16 %v1091
    %v1286 = vunpack.c.l.b16 %v1092
    %v1287 = vunpack.c.h.b16 %v1092
    %v1288 = vunpack.c.l.b16 %v1093
    %v1289 = vunpack.c.h.b16 %v1093
    %v1290 = vunpack.c.l.b16 %v1094
    %v1291 = vunpack.c.h.b16 %v1094
    %v1292 = vunpack.c.l.b16 %v1095
    %v1293 = vunpack.c.h.b16 %v1095
    %v1294 = vunpack.c.l.b16 %v1096
    %v1295 = vunpack.c.h.b16 %v1096
    %v1296 = vunpack.c.l.b16 %v1097
    %v1297 = vunpack.c.h.b16 %v1097
    %v1298 = vunpack.c.l.b16 %v1098
    %v1299 = vunpack.c.h.b16 %v1098
    %v1300 = vunpack.c.l.b16 %v1099
    %v1301 = vunpack.c.h.b16 %v1099
    %v1302 = vunpack.c.l.b16 %v1100
    %v1303 = vunpack.c.h.b16 %v1100
    %v1304 = vunpack.c.l.b16 %v1101
    %v1305 = vunpack.c.h.b16 %v1101
    %v1306 = vpack.c.b16 %v1180, %v1178
    %v1307 = vpack.c.b16 %v1181, %v1179
    %v1308 = vpack.c.b16 %v1184, %v1182
    %v1309 = vpack.c.b16 %v1185, %v1183
    %v1310 = vpack.c.b16 %v1188, %v1186
    %v1311 = vpack.c.b16 %v1189, %v1187
    %v1312 = vpack.c.b16 %v1192, %v1190
    %v1313 = vpack.c.b16 %v1193, %v1191
    %v1314 = vpack.c.b16 %v1196, %v1194
    %v1315 = vpack.c.b16 %v1197, %v1195
    %v1316 = vpack.c.b16 %v1200, %v1198
    %v1317 = vpack.c.b16 %v1201, %v1199
    %v1318 = vpack.c.b16 %v1204, %v1202
    %v1319 = vpack.c.b16 %v1205, %v1203
    %v1320 = vpack.c.b16 %v1208, %v1206
    %v1321 = vpack.c.b16 %v1209, %v1207
    %v1322 = vpack.c.b16 %v1212, %v1210
    %v1323 = vpack.c.b16 %v1213, %v1211
    %v1324 = vpack.c.b16 %v1216, %v1214
    %v1325 = vpack.c.b16 %v1217, %v1215
    %v1326 = vpack.c.b16 %v1220, %v1218
    %v1327 = vpack.c.b16 %v1221, %v1219
    %v1328 = vpack.c.b16 %v1224, %v1222
    %v1329 = vpack.c.b16 %v1225, %v1223
    %v1330 = vpack.c.b16 %v1228, %v1226
    %v1331 = vpack.c.b16 %v1229, %v1227
    %v1332 = vpack.c.b16 %v1232, %v1230
    %v1333 = vpack.c.b16 %v1233, %v1231
    %v1334 = vpack.c.b16 %v1236, %v1234
    %v1335 = vpack.c.b16 %v1237, %v1235
    %v1336 = vpack.c.b16 %v1240, %v1238
    %v1337 = vpack.c.b16 %v1241, %v1239
    %v1338 = vpack.c.b16 %v1244, %v1242
    %v1339 = vpack.c.b16 %v1245, %v1243
    %v1340 = vpack.c.b16 %v1248, %v1246
    %v1341 = vpack.c.b16 %v1249, %v1247
    %v1342 = vpack.c.b16 %v1252, %v1250
    %v1343 = vpack.c.b16 %v1253, %v1251
    %v1344 = vpack.c.b16 %v1256, %v1254
    %v1345 = vpack.c.b16 %v1257, %v1255
    %v1346 = vpack.c.b16 %v1260, %v1258
    %v1347 = vpack.c.b16 %v1261, %v1259
    %v1348 = vpack.c.b16 %v1264, %v1262
    %v1349 = vpack.c.b16 %v1265, %v1263
    %v1350 = vpack.c.b16 %v1268, %v1266
    %v1351 = vpack.c.b16 %v1269, %v1267
    %v1352 = vpack.c.b16 %v1272, %v1270
    %v1353 = vpack.c.b16 %v1273, %v1271
    %v1354 = vpack.c.b16 %v1276, %v1274
    %v1355 = vpack.c.b16 %v1277, %v1275
    %v1356 = vpack.c.b16 %v1280, %v1278
    %v1357 = vpack.c.b16 %v1281, %v1279
    %v1358 = vpack.c.b16 %v1284, %v1282
    %v1359 = vpack.c.b16 %v1285, %v1283
    %v1360 = vpack.c.b16 %v1288, %v1286
    %v1361 = vpack.c.b16 %v1289, %v1287
    %v1362 = vpack.c.b16 %v1292, %v1290
    %v1363 = vpack.c.b16 %v1293, %v1291
    %v1364 = vpack.c.b16 %v1296, %v1294
    %v1365 = vpack.c.b16 %v1297, %v1295
    %v1366 = vpack.c.b16 %v1300, %v1298
    %v1367 = vpack.c.b16 %v1301, %v1299
    %v1368 = vpack.c.b16 %v1304, %v1302
    %v1369 = vpack.c.b16 %v1305, %v1303
    %1434 = vmatprep.subr.bf16.mxu0 %v1321
    %1435 = vmatpush1.bf16.msra.mxu0 %v1320
    %1436 = vmatprep.subr.bf16.mxu0 %v1319
    %1437 = vmatpush1.bf16.msra.mxu0 %v1318
    %1438 = vmatprep.subr.bf16.mxu0 %v1317
    %1439 = vmatpush1.bf16.msra.mxu0 %v1316
    %1440 = vmatprep.subr.bf16.mxu0 %v1315
    %1441 = vmatpush1.bf16.msra.mxu0 %v1314
    %1442 = vmatprep.subr.bf16.mxu0 %v1313
    %1443 = vmatpush1.bf16.msra.mxu0 %v1312
    %1444 = vmatprep.subr.bf16.mxu0 %v1311
    %1445 = vmatpush1.bf16.msra.mxu0 %v1310
    %1446 = vmatprep.subr.bf16.mxu0 %v1309
    %1447 = vmatpush1.bf16.msra.mxu0 %v1308
    %1448 = vmatprep.subr.bf16.mxu0 %v1307
    %1449 = vmatpush1.bf16.msra.mxu0 %v1306
    %1450 = vmatprep.subr.bf16.mxu0 %v1337
    %1451 = vmatpush2.bf16.msra.mxu0 %v1336
    %1452 = vmatprep.subr.bf16.mxu0 %v1335
    %1453 = vmatpush2.bf16.msra.mxu0 %v1334
    %1454 = vmatprep.subr.bf16.mxu0 %v1333
    %1455 = vmatpush2.bf16.msra.mxu0 %v1332
    %1456 = vmatprep.subr.bf16.mxu0 %v1331
    %1457 = vmatpush2.bf16.msra.mxu0 %v1330
    %1458 = vmatprep.subr.bf16.mxu0 %v1329
    %1459 = vmatpush2.bf16.msra.mxu0 %v1328
    %1460 = vmatprep.subr.bf16.mxu0 %v1327
    %1461 = vmatpush2.bf16.msra.mxu0 %v1326
    %1462 = vmatprep.subr.bf16.mxu0 %v1325
    %1463 = vmatpush2.bf16.msra.mxu0 %v1324
    %1464 = vmatprep.subr.bf16.mxu0 %v1323
    %1465 = vmatpush2.bf16.msra.mxu0 %v1322
    %1466 = vmatprep.mubr.bf16.mxu0 %v1035
    %1467 = vmatmul.mubr.bf16.gmra.mxu0 %v1034
    %v1468 = vpop.f32.mrf.mxu0
    %v1469 = vadd.f32 %v1107, %v1468
    %v1470 = vpop.f32.mrf.mxu0
    %v1471 = vadd.f32 %v1111, %v1470
    %v1472 = vpop.f32.mrf.mxu0
    %v1473 = vpop.f32.mrf.mxu0
    %1474 = vdwg.mxu0
    %1475 = vmatprep.subr.bf16.mxu0 %v1353
    %1476 = vmatpush1.bf16.msra.mxu0 %v1352
    %1477 = vmatprep.subr.bf16.mxu0 %v1351
    %1478 = vmatpush1.bf16.msra.mxu0 %v1350
    %1479 = vmatprep.subr.bf16.mxu0 %v1349
    %1480 = vmatpush1.bf16.msra.mxu0 %v1348
    %1481 = vmatprep.subr.bf16.mxu0 %v1347
    %1482 = vmatpush1.bf16.msra.mxu0 %v1346
    %1483 = vmatprep.subr.bf16.mxu0 %v1345
    %1484 = vmatpush1.bf16.msra.mxu0 %v1344
    %1485 = vmatprep.subr.bf16.mxu0 %v1343
    %1486 = vmatpush1.bf16.msra.mxu0 %v1342
    %1487 = vmatprep.subr.bf16.mxu0 %v1341
    %1488 = vmatpush1.bf16.msra.mxu0 %v1340
    %1489 = vmatprep.subr.bf16.mxu0 %v1339
    %1490 = vmatpush1.bf16.msra.mxu0 %v1338
    %1491 = vmatprep.subr.bf16.mxu0 %v1369
    %1492 = vmatpush2.bf16.msra.mxu0 %v1368
    %1493 = vmatprep.subr.bf16.mxu0 %v1367
    %1494 = vmatpush2.bf16.msra.mxu0 %v1366
    %1495 = vmatprep.subr.bf16.mxu0 %v1365
    %1496 = vmatpush2.bf16.msra.mxu0 %v1364
    %1497 = vmatprep.subr.bf16.mxu0 %v1363
    %1498 = vmatpush2.bf16.msra.mxu0 %v1362
    %1499 = vmatprep.subr.bf16.mxu0 %v1361
    %1500 = vmatpush2.bf16.msra.mxu0 %v1360
    %1501 = vmatprep.subr.bf16.mxu0 %v1359
    %1502 = vmatpush2.bf16.msra.mxu0 %v1358
    %1503 = vmatprep.subr.bf16.mxu0 %v1357
    %1504 = vmatpush2.bf16.msra.mxu0 %v1356
    %1505 = vmatprep.subr.bf16.mxu0 %v1355
    %1506 = vmatpush2.bf16.msra.mxu0 %v1354
    %1507 = vmatprep.mubr.bf16.mxu0 %v1037
    %1508 = vmatmul.mubr.bf16.gmra.mxu0 %v1036
    %v1509 = vpop.f32.mrf.mxu0
    %v1510 = vadd.f32 %v1469, %v1509
    %v1511 = vpop.f32.mrf.mxu0
    %v1512 = vadd.f32 %v1471, %v1511
    %v1513 = vpop.f32.mrf.mxu0
    %v1514 = vpop.f32.mrf.mxu0
    %1515 = vdwg.mxu0
    %v1516 = vmax.f32 %v1510, 0.0
    %v1517 = vmax.f32 %v1512, 0.0
    %v1518 = vld [vmem:[%s5] sm:$0x3]
    %v1519 = vpack.c.bf16 %v1516, %v1516
    %v1520 = vpack.c.bf16 %v1517, %v1517
    %s1521 = sld [smem:[#allocation2]]
    %v1522 = vstv %s1521
    %v1525 = vunpack.c.l.s4 1966171168
    %v1526 = vunpack.c.0.s8 %v1525
    %v1527 = vlaneseq
    %v1528 = vshrl.u32 %v1527, 7
    %v1529 = vsub.s32 %v1526, %v1528
    %v1530 = vrot.slane %v1518, %v1529
    %v1531 = vcombine.high %v1530, %v1530
    %v1533 = vunpack.c.l.s4 1966171168
    %v1534 = vunpack.c.0.s8 %v1533
    %v1535 = vlaneseq
    %v1536 = vshrl.u32 %v1535, 7
    %v1537 = vsub.s32 %v1534, %v1536
    %v1538 = vrot.slane %v1530, %v1537
    %v1540 = vunpack.c.l.s4 1966171168
    %v1541 = vunpack.c.0.s8 %v1540
    %v1542 = vlaneseq
    %v1543 = vshrl.u32 %v1542, 7
    %v1544 = vsub.s32 %v1541, %v1543
    %v1545 = vrot.slane %v1531, %v1544
    %1548 = vmatprep.subr.bf16.mxu0 0
    %1549 = vmatpush1.bf16.xpose.msra.mxu0 0
    %1550 = vmatprep.subr.bf16.mxu0 0
    %1551 = vmatpush1.bf16.xpose.msra.mxu0 0
    %1552 = vmatprep.subr.bf16.mxu0 0
    %1553 = vmatpush1.bf16.xpose.msra.mxu0 0
    %1554 = vmatprep.subr.bf16.mxu0 0
    %1555 = vmatpush1.bf16.xpose.msra.mxu0 0
    %1556 = vmatprep.subr.bf16.mxu0 0
    %1557 = vmatpush1.bf16.xpose.msra.mxu0 0
    %1558 = vmatprep.subr.bf16.mxu0 0
    %1559 = vmatpush1.bf16.xpose.msra.mxu0 0
    %1560 = vmatprep.subr.bf16.mxu0 0
    %1561 = vmatpush1.bf16.xpose.msra.mxu0 0
    %1562 = vmatprep.subr.bf16.mxu0 %v1520
    %1563 = vmatpush1.bf16.xpose.msra.mxu0 %v1519
    %1564 = vmatprep.subr.bf16.mxu0 0
    %1565 = vmatpush2.bf16.xpose.msra.mxu0 0
    %1566 = vmatprep.subr.bf16.mxu0 0
    %1567 = vmatpush2.bf16.xpose.msra.mxu0 0
    %1568 = vmatprep.subr.bf16.mxu0 0
    %1569 = vmatpush2.bf16.xpose.msra.mxu0 0
    %1570 = vmatprep.subr.bf16.mxu0 0
    %1571 = vmatpush2.bf16.xpose.msra.mxu0 0
    %1572 = vmatprep.subr.bf16.mxu0 0
    %1573 = vmatpush2.bf16.xpose.msra.mxu0 0
    %1574 = vmatprep.subr.bf16.mxu0 0
    %1575 = vmatpush2.bf16.xpose.msra.mxu0 0
    %1576 = vmatprep.subr.bf16.mxu0 0
    %1577 = vmatpush2.bf16.xpose.msra.mxu0 0
    %1578 = vmatprep.subr.bf16.mxu0 0
    %1579 = vmatpush2.bf16.xpose.msra.mxu0 0
    %1580 = vmatprep.mubr.bf16.mxu0 %v1545
    %1581 = vmatmul.mubr.bf16.gmra.mxu0 %v1538
    %v1582 = vpop.f32.mrf.mxu0
    %v1583 = vadd.f32 %v1522, %v1582
    %v1584 = vpop.f32.mrf.mxu0
    %v1585 = vpop.f32.mrf.mxu0
    %v1586 = vpop.f32.mrf.mxu0
    %1587 = vdwg.mxu0
    %vm1588 = vcmask 57344
    %1589 = vst.msk [vmem:[#allocation9] sm:$0x1] %vm1588, %v1583
    // Predicated region
    $region42: #{tpu_custom_call.1} parent=1 // pred_check
      _
    $region43: #{tpu_custom_call.1} parent=1 // pred_check_branch
      %1591 = sbr.rel (0) target = $region45
    $region44: #{tpu_custom_call.1} parent=1 // pred_region
      %s1593 = ssub.s32 16, 16
      %1594 = vsyncadd [#allocation5], %s1593
      %s1596 = sshll.u32 [#allocation9], 4
      %s1597 = int_to_ptr.vmem [resolvable:$true] %s1596
      %1599 = dma.vmem_to_hbm [thread:$0]  %s1597, 16, %s7, [#allocation5]
    $region45: #{tpu_custom_call.1} parent=1 // pred_fallthru
      _
    // Predicated region
    $region46: #{tpu_custom_call.1} parent=1 // pred_check
      _
    $region47: #{tpu_custom_call.1} parent=1 // pred_check_branch
      %1601 = sbr.rel (0) target = $region49
    $region48: #{tpu_custom_call.1} parent=1 // pred_region
      %1602 = dma.done [#allocation5], 16
    $region49: #{tpu_custom_call.1} parent=1 // pred_fallthru
      _
    %1603 = vsyncpa [#allocation4], 1
    %1604 = vsyncpa [#allocation7], 1
    %1605 = vsyncpa [#allocation5], 1

</llo_original>
